<compile_context>
chip_gen: v7x
topology: tpu7x:2x2x1
jax: 0.10.0
libtpu: 0.0.40
codegen_flags: <defaults>
</compile_context>

<pallas_src>
import functools

import jax
import jax.numpy as jnp
from jax.experimental import pallas as pl
from jax.experimental.pallas import tpu as pltpu

_BN_EPS = 1e-5


# ---------------------------------------------------------------------------
# Fused Pallas kernel
# ---------------------------------------------------------------------------
def _bn_relu(y, gb):
    # y: (B, H) f32, gb: (2, H) with gamma in row 0, beta in row 1.
    mean = jnp.mean(y, axis=0, keepdims=True)
    centered = y - mean
    var = jnp.mean(centered * centered, axis=0, keepdims=True)
    y_hat = centered * jax.lax.rsqrt(var + _BN_EPS)
    out = y_hat * gb[0:1, :] + gb[1:2, :]
    return jnp.maximum(out, 0.0)


def _dann_fused_kernel(x_ref, f1_w_ref, f2_w_ref, cd1_w_ref, cd2_w_ref,
                       cd3_w_ref, f1_gb_ref, f2_gb_ref, cd1_gb_ref,
                       cd2_gb_ref, cd3_b_ref, out_ref):
    x = x_ref[...]

    # FeatureExtractor: (Linear -> BN -> ReLU) x 2  (biases cancelled by BN)
    h = _bn_relu(
        jnp.dot(x, f1_w_ref[...], preferred_element_type=jnp.float32),
        f1_gb_ref[...])
    feature = _bn_relu(
        jnp.dot(h, f2_w_ref[...], preferred_element_type=jnp.float32),
        f2_gb_ref[...])

    # ReverseLayer.apply(feature, alpha) is identity in the forward pass.
    # Classifier + Domain_Classifier heads merged along the lane axis:
    #   layer 1: lane-concatenated weights, layers 2/3: block-diagonal.
    cd = _bn_relu(
        jnp.dot(feature, cd1_w_ref[...], preferred_element_type=jnp.float32),
        cd1_gb_ref[...])
    cd = _bn_relu(
        jnp.dot(cd, cd2_w_ref[...], preferred_element_type=jnp.float32),
        cd2_gb_ref[...])
    y = jnp.dot(cd, cd3_w_ref[...],
                preferred_element_type=jnp.float32) + cd3_b_ref[...]
    out_ref[...] = jnp.maximum(y, 0.0).astype(out_ref.dtype)


def _vmem_spec():
    return pl.BlockSpec(memory_space=pltpu.MemorySpace.VMEM)


@functools.partial(jax.jit, static_argnames=("c_out",))
def dann_forward(packed, x, c_out, alpha=1.0):
    """Fused DANN forward. Returns (class_output, domain_output)."""
    del alpha  # gradient reversal is a forward no-op
    B = x.shape[0]
    out_dim = packed["cd3_w"].shape[1]
    out = pl.pallas_call(
        _dann_fused_kernel,
        out_shape=jax.ShapeDtypeStruct((B, out_dim), jnp.float32),
        in_specs=[_vmem_spec()] * 11,
        out_specs=_vmem_spec(),
    )(x,
      packed["f1_w"], packed["f2_w"],
      packed["cd1_w"], packed["cd2_w"], packed["cd3_w"],
      packed["f1_gb"], packed["f2_gb"],
      packed["cd1_gb"], packed["cd2_gb"], packed["cd3_b"])
    return out[:, :c_out], out[:, c_out:]


# ---------------------------------------------------------------------------
# Parameter construction (deterministic, synthetic) + packing
# ---------------------------------------------------------------------------
def _make_linear(key, d_in, d_out):
    kw, kb = jax.random.split(key)
    bound = 1.0 / jnp.sqrt(d_in)
    # PyTorch nn.Linear default init: U(-1/sqrt(fan_in), 1/sqrt(fan_in)).
    w = jax.random.uniform(kw, (d_in, d_out), jnp.float32, -bound, bound)
    b = jax.random.uniform(kb, (1, d_out), jnp.float32, -bound, bound)
    return w, b


def _make_bn(d):
    # BatchNorm1d default init: gamma=1, beta=0.
    return jnp.ones((1, d), jnp.float32), jnp.zeros((1, d), jnp.float32)


def make_dann_params(key, D_in, F_Hidden1, F_out,
                     C_Hidden1, C_Hidden2, C_out,
                     DC_Hidden1, DC_Hidden2, DC_out):
    keys = jax.random.split(key, 8)
    p = {}
    # FeatureExtractor
    p["f1_w"], p["f1_b"] = _make_linear(keys[0], D_in, F_Hidden1)
    p["f1_g"], p["f1_be"] = _make_bn(F_Hidden1)
    p["f2_w"], p["f2_b"] = _make_linear(keys[1], F_Hidden1, F_out)
    p["f2_g"], p["f2_be"] = _make_bn(F_out)
    # Classifier
    p["c1_w"], p["c1_b"] = _make_linear(keys[2], F_out, C_Hidden1)
    p["c1_g"], p["c1_be"] = _make_bn(C_Hidden1)
    p["c2_w"], p["c2_b"] = _make_linear(keys[3], C_Hidden1, C_Hidden2)
    p["c2_g"], p["c2_be"] = _make_bn(C_Hidden2)
    p["c3_w"], p["c3_b"] = _make_linear(keys[4], C_Hidden2, C_out)
    # Domain classifier
    p["d1_w"], p["d1_b"] = _make_linear(keys[5], F_out, DC_Hidden1)
    p["d1_g"], p["d1_be"] = _make_bn(DC_Hidden1)
    p["d2_w"], p["d2_b"] = _make_linear(keys[6], DC_Hidden1, DC_Hidden2)
    p["d2_g"], p["d2_be"] = _make_bn(DC_Hidden2)
    p["d3_w"], p["d3_b"] = _make_linear(keys[7], DC_Hidden2, DC_out)
    return p


def pack_dann_params(p):
    """Pack per-layer params into the fused-kernel layout (done once)."""
    def block_diag(a, b):
        top = jnp.concatenate(
            [a, jnp.zeros((a.shape[0], b.shape[1]), a.dtype)], axis=1)
        bot = jnp.concatenate(
            [jnp.zeros((b.shape[0], a.shape[1]), b.dtype), b], axis=1)
        return jnp.concatenate([top, bot], axis=0)

    def gb(g, be):
        return jnp.concatenate([g, be], axis=0)          # (2, H)

    def gb2(g1, be1, g2, be2):
        return jnp.concatenate(
            [jnp.concatenate([g1, g2], axis=1),
             jnp.concatenate([be1, be2], axis=1)], axis=0)  # (2, H1+H2)

    # Linear biases of Linear+BN layers are intentionally dropped
    # (mathematically cancelled by the BN mean subtraction).
    return {
        "f1_w": p["f1_w"],
        "f2_w": p["f2_w"],
        "cd1_w": jnp.concatenate([p["c1_w"], p["d1_w"]], axis=1),
        "cd2_w": block_diag(p["c2_w"], p["d2_w"]),
        "cd3_w": block_diag(p["c3_w"], p["d3_w"]),
        "f1_gb": gb(p["f1_g"], p["f1_be"]),
        "f2_gb": gb(p["f2_g"], p["f2_be"]),
        "cd1_gb": gb2(p["c1_g"], p["c1_be"], p["d1_g"], p["d1_be"]),
        "cd2_gb": gb2(p["c2_g"], p["c2_be"], p["d2_g"], p["d2_be"]),
        "cd3_b": jnp.concatenate([p["c3_b"], p["d3_b"]], axis=1),
    }


# ---------------------------------------------------------------------------
# Pure-JAX reference (uses the original per-layer params, WITH biases)
# ---------------------------------------------------------------------------
def _ref_lbr(x, w, b, g, be):
    y = x @ w + b
    m = y.mean(0, keepdims=True)
    v = ((y - m) ** 2).mean(0, keepdims=True)
    return jnp.maximum((y - m) / jnp.sqrt(v + _BN_EPS) * g + be, 0.0)


def _ref_lr(x, w, b):
    return jnp.maximum(x @ w + b, 0.0)


def dann_forward_ref(p, x):
    h = _ref_lbr(x, p["f1_w"], p["f1_b"], p["f1_g"], p["f1_be"])
    f = _ref_lbr(h, p["f2_w"], p["f2_b"], p["f2_g"], p["f2_be"])
    c = _ref_lbr(f, p["c1_w"], p["c1_b"], p["c1_g"], p["c1_be"])
    c = _ref_lbr(c, p["c2_w"], p["c2_b"], p["c2_g"], p["c2_be"])
    c = _ref_lr(c, p["c3_w"], p["c3_b"])
    d = _ref_lbr(f, p["d1_w"], p["d1_b"], p["d1_g"], p["d1_be"])
    d = _ref_lbr(d, p["d2_w"], p["d2_b"], p["d2_g"], p["d2_be"])
    d = _ref_lr(d, p["d3_w"], p["d3_b"])
    return c, d


if __name__ == "__main__":
    # Small shapes consistent with the module's all-MLP forward.
    B = 8
    D_in, F_Hidden1, F_out = 32, 64, 32
    C_Hidden1, C_Hidden2, C_out = 32, 32, 16
    DC_Hidden1, DC_Hidden2, DC_out = 32, 32, 8

    key = jax.random.PRNGKey(0)
    k_params, k_x = jax.random.split(key)
    params = make_dann_params(k_params, D_in, F_Hidden1, F_out,
                              C_Hidden1, C_Hidden2, C_out,
                              DC_Hidden1, DC_Hidden2, DC_out)
    packed = jax.tree_util.tree_map(jax.device_put, pack_dann_params(params))
    x = jax.random.normal(k_x, (B, D_in), jnp.float32)

    class_out, domain_out = dann_forward(packed, x, C_out)
    jax.block_until_ready((class_out, domain_out))

    ref_c, ref_d = dann_forward_ref(params, x)
    assert class_out.shape == (B, C_out)
    assert domain_out.shape == (B, DC_out)
    assert jnp.allclose(class_out, ref_c, atol=1e-4, rtol=1e-4)
    assert jnp.allclose(domain_out, ref_d, atol=1e-4, rtol=1e-4)

    # TODO(synk): ReverseLayer's gradient reversal is backward-only; this
    # script implements the forward pass (identity) only.
    print("KERNEL_OK")
</pallas_src>

<mosaic_0001>
module attributes {stable_mosaic.version = 11 : i64} {
  func.func @_dann_fused_kernel(%arg0: memref<8x32xf32, #tpu.memory_space<vmem>>, %arg1: memref<32x64xf32, #tpu.memory_space<vmem>>, %arg2: memref<64x32xf32, #tpu.memory_space<vmem>>, %arg3: memref<32x64xf32, #tpu.memory_space<vmem>>, %arg4: memref<64x64xf32, #tpu.memory_space<vmem>>, %arg5: memref<64x24xf32, #tpu.memory_space<vmem>>, %arg6: memref<2x64xf32, #tpu.memory_space<vmem>>, %arg7: memref<2x32xf32, #tpu.memory_space<vmem>>, %arg8: memref<2x64xf32, #tpu.memory_space<vmem>>, %arg9: memref<2x64xf32, #tpu.memory_space<vmem>>, %arg10: memref<1x24xf32, #tpu.memory_space<vmem>>, %arg11: memref<8x24xf32, #tpu.memory_space<vmem>>) attributes {dimension_semantics = [], scalar_prefetch = 0 : i64, scratch_operands = 0 : i64, tpu.core_type = #tpu.core_type<tc>} {
    %c0 = arith.constant 0 : index
    %c0_0 = arith.constant 0 : index
    %0 = vector.load %arg0[%c0, %c0_0] : memref<8x32xf32, #tpu.memory_space<vmem>>, vector<8x32xf32>
    %c0_1 = arith.constant 0 : index
    %c0_2 = arith.constant 0 : index
    %1 = vector.load %arg1[%c0_1, %c0_2] : memref<32x64xf32, #tpu.memory_space<vmem>>, vector<32x64xf32>
    %cst = arith.constant dense<0.000000e+00> : vector<8x64xf32>
    %2 = tpu.matmul %0, %1, %cst {dimension_numbers = #tpu.dot_dimension_numbers<[1], [0], [0], [1], [0, 0, 1, 1], [], []>} : vector<8x32xf32>, vector<32x64xf32>, vector<8x64xf32> -> vector<8x64xf32>
    %c0_3 = arith.constant 0 : index
    %c0_4 = arith.constant 0 : index
    %3 = vector.load %arg6[%c0_3, %c0_4] : memref<2x64xf32, #tpu.memory_space<vmem>>, vector<2x64xf32>
    %cst_5 = arith.constant dense<0.000000e+00> : vector<64xf32>
    %4 = vector.multi_reduction <add>, %2, %cst_5 [0] : vector<8x64xf32> to vector<64xf32>
    %5 = vector.shape_cast %4 : vector<64xf32> to vector<1x64xf32>
    %cst_6 = arith.constant 8.000000e+00 : f32
    %6 = vector.broadcast %cst_6 : f32 to vector<1x64xf32>
    %7 = arith.divf %5, %6 : vector<1x64xf32>
    %8 = vector.broadcast %7 : vector<1x64xf32> to vector<8x64xf32>
    %9 = arith.subf %2, %8 : vector<8x64xf32>
    %10 = arith.mulf %9, %9 : vector<8x64xf32>
    %cst_7 = arith.constant dense<0.000000e+00> : vector<64xf32>
    %11 = vector.multi_reduction <add>, %10, %cst_7 [0] : vector<8x64xf32> to vector<64xf32>
    %12 = vector.shape_cast %11 : vector<64xf32> to vector<1x64xf32>
    %cst_8 = arith.constant 8.000000e+00 : f32
    %13 = vector.broadcast %cst_8 : f32 to vector<1x64xf32>
    %14 = arith.divf %12, %13 : vector<1x64xf32>
    %cst_9 = arith.constant 9.99999974E-6 : f32
    %15 = vector.broadcast %cst_9 : f32 to vector<1x64xf32>
    %16 = arith.addf %14, %15 : vector<1x64xf32>
    %17 = math.rsqrt %16 : vector<1x64xf32>
    %18 = vector.broadcast %17 : vector<1x64xf32> to vector<8x64xf32>
    %19 = arith.mulf %9, %18 : vector<8x64xf32>
    %20 = vector.extract_strided_slice %3 {offsets = [0, 0], sizes = [1, 64], strides = [1, 1]} : vector<2x64xf32> to vector<1x64xf32>
    %21 = vector.broadcast %20 : vector<1x64xf32> to vector<8x64xf32>
    %22 = arith.mulf %19, %21 : vector<8x64xf32>
    %23 = vector.extract_strided_slice %3 {offsets = [1, 0], sizes = [1, 64], strides = [1, 1]} : vector<2x64xf32> to vector<1x64xf32>
    %24 = vector.broadcast %23 : vector<1x64xf32> to vector<8x64xf32>
    %25 = arith.addf %22, %24 : vector<8x64xf32>
    %cst_10 = arith.constant 0.000000e+00 : f32
    %26 = vector.broadcast %cst_10 : f32 to vector<8x64xf32>
    %27 = arith.maximumf %25, %26 : vector<8x64xf32>
    %c0_11 = arith.constant 0 : index
    %c0_12 = arith.constant 0 : index
    %28 = vector.load %arg2[%c0_11, %c0_12] : memref<64x32xf32, #tpu.memory_space<vmem>>, vector<64x32xf32>
    %cst_13 = arith.constant dense<0.000000e+00> : vector<8x32xf32>
    %29 = tpu.matmul %27, %28, %cst_13 {dimension_numbers = #tpu.dot_dimension_numbers<[1], [0], [0], [1], [0, 0, 1, 1], [], []>} : vector<8x64xf32>, vector<64x32xf32>, vector<8x32xf32> -> vector<8x32xf32>
    %c0_14 = arith.constant 0 : index
    %c0_15 = arith.constant 0 : index
    %30 = vector.load %arg7[%c0_14, %c0_15] : memref<2x32xf32, #tpu.memory_space<vmem>>, vector<2x32xf32>
    %cst_16 = arith.constant dense<0.000000e+00> : vector<32xf32>
    %31 = vector.multi_reduction <add>, %29, %cst_16 [0] : vector<8x32xf32> to vector<32xf32>
    %32 = vector.shape_cast %31 : vector<32xf32> to vector<1x32xf32>
    %cst_17 = arith.constant 8.000000e+00 : f32
    %33 = vector.broadcast %cst_17 : f32 to vector<1x32xf32>
    %34 = arith.divf %32, %33 : vector<1x32xf32>
    %35 = vector.broadcast %34 : vector<1x32xf32> to vector<8x32xf32>
    %36 = arith.subf %29, %35 : vector<8x32xf32>
    %37 = arith.mulf %36, %36 : vector<8x32xf32>
    %cst_18 = arith.constant dense<0.000000e+00> : vector<32xf32>
    %38 = vector.multi_reduction <add>, %37, %cst_18 [0] : vector<8x32xf32> to vector<32xf32>
    %39 = vector.shape_cast %38 : vector<32xf32> to vector<1x32xf32>
    %cst_19 = arith.constant 8.000000e+00 : f32
    %40 = vector.broadcast %cst_19 : f32 to vector<1x32xf32>
    %41 = arith.divf %39, %40 : vector<1x32xf32>
    %cst_20 = arith.constant 9.99999974E-6 : f32
    %42 = vector.broadcast %cst_20 : f32 to vector<1x32xf32>
    %43 = arith.addf %41, %42 : vector<1x32xf32>
    %44 = math.rsqrt %43 : vector<1x32xf32>
    %45 = vector.broadcast %44 : vector<1x32xf32> to vector<8x32xf32>
    %46 = arith.mulf %36, %45 : vector<8x32xf32>
    %47 = vector.extract_strided_slice %30 {offsets = [0, 0], sizes = [1, 32], strides = [1, 1]} : vector<2x32xf32> to vector<1x32xf32>
    %48 = vector.broadcast %47 : vector<1x32xf32> to vector<8x32xf32>
    %49 = arith.mulf %46, %48 : vector<8x32xf32>
    %50 = vector.extract_strided_slice %30 {offsets = [1, 0], sizes = [1, 32], strides = [1, 1]} : vector<2x32xf32> to vector<1x32xf32>
    %51 = vector.broadcast %50 : vector<1x32xf32> to vector<8x32xf32>
    %52 = arith.addf %49, %51 : vector<8x32xf32>
    %cst_21 = arith.constant 0.000000e+00 : f32
    %53 = vector.broadcast %cst_21 : f32 to vector<8x32xf32>
    %54 = arith.maximumf %52, %53 : vector<8x32xf32>
    %c0_22 = arith.constant 0 : index
    %c0_23 = arith.constant 0 : index
    %55 = vector.load %arg3[%c0_22, %c0_23] : memref<32x64xf32, #tpu.memory_space<vmem>>, vector<32x64xf32>
    %cst_24 = arith.constant dense<0.000000e+00> : vector<8x64xf32>
    %56 = tpu.matmul %54, %55, %cst_24 {dimension_numbers = #tpu.dot_dimension_numbers<[1], [0], [0], [1], [0, 0, 1, 1], [], []>} : vector<8x32xf32>, vector<32x64xf32>, vector<8x64xf32> -> vector<8x64xf32>
    %c0_25 = arith.constant 0 : index
    %c0_26 = arith.constant 0 : index
    %57 = vector.load %arg8[%c0_25, %c0_26] : memref<2x64xf32, #tpu.memory_space<vmem>>, vector<2x64xf32>
    %cst_27 = arith.constant dense<0.000000e+00> : vector<64xf32>
    %58 = vector.multi_reduction <add>, %56, %cst_27 [0] : vector<8x64xf32> to vector<64xf32>
    %59 = vector.shape_cast %58 : vector<64xf32> to vector<1x64xf32>
    %cst_28 = arith.constant 8.000000e+00 : f32
    %60 = vector.broadcast %cst_28 : f32 to vector<1x64xf32>
    %61 = arith.divf %59, %60 : vector<1x64xf32>
    %62 = vector.broadcast %61 : vector<1x64xf32> to vector<8x64xf32>
    %63 = arith.subf %56, %62 : vector<8x64xf32>
    %64 = arith.mulf %63, %63 : vector<8x64xf32>
    %cst_29 = arith.constant dense<0.000000e+00> : vector<64xf32>
    %65 = vector.multi_reduction <add>, %64, %cst_29 [0] : vector<8x64xf32> to vector<64xf32>
    %66 = vector.shape_cast %65 : vector<64xf32> to vector<1x64xf32>
    %cst_30 = arith.constant 8.000000e+00 : f32
    %67 = vector.broadcast %cst_30 : f32 to vector<1x64xf32>
    %68 = arith.divf %66, %67 : vector<1x64xf32>
    %cst_31 = arith.constant 9.99999974E-6 : f32
    %69 = vector.broadcast %cst_31 : f32 to vector<1x64xf32>
    %70 = arith.addf %68, %69 : vector<1x64xf32>
    %71 = math.rsqrt %70 : vector<1x64xf32>
    %72 = vector.broadcast %71 : vector<1x64xf32> to vector<8x64xf32>
    %73 = arith.mulf %63, %72 : vector<8x64xf32>
    %74 = vector.extract_strided_slice %57 {offsets = [0, 0], sizes = [1, 64], strides = [1, 1]} : vector<2x64xf32> to vector<1x64xf32>
    %75 = vector.broadcast %74 : vector<1x64xf32> to vector<8x64xf32>
    %76 = arith.mulf %73, %75 : vector<8x64xf32>
    %77 = vector.extract_strided_slice %57 {offsets = [1, 0], sizes = [1, 64], strides = [1, 1]} : vector<2x64xf32> to vector<1x64xf32>
    %78 = vector.broadcast %77 : vector<1x64xf32> to vector<8x64xf32>
    %79 = arith.addf %76, %78 : vector<8x64xf32>
    %cst_32 = arith.constant 0.000000e+00 : f32
    %80 = vector.broadcast %cst_32 : f32 to vector<8x64xf32>
    %81 = arith.maximumf %79, %80 : vector<8x64xf32>
    %c0_33 = arith.constant 0 : index
    %c0_34 = arith.constant 0 : index
    %82 = vector.load %arg4[%c0_33, %c0_34] : memref<64x64xf32, #tpu.memory_space<vmem>>, vector<64x64xf32>
    %cst_35 = arith.constant dense<0.000000e+00> : vector<8x64xf32>
    %83 = tpu.matmul %81, %82, %cst_35 {dimension_numbers = #tpu.dot_dimension_numbers<[1], [0], [0], [1], [0, 0, 1, 1], [], []>} : vector<8x64xf32>, vector<64x64xf32>, vector<8x64xf32> -> vector<8x64xf32>
    %c0_36 = arith.constant 0 : index
    %c0_37 = arith.constant 0 : index
    %84 = vector.load %arg9[%c0_36, %c0_37] : memref<2x64xf32, #tpu.memory_space<vmem>>, vector<2x64xf32>
    %cst_38 = arith.constant dense<0.000000e+00> : vector<64xf32>
    %85 = vector.multi_reduction <add>, %83, %cst_38 [0] : vector<8x64xf32> to vector<64xf32>
    %86 = vector.shape_cast %85 : vector<64xf32> to vector<1x64xf32>
    %cst_39 = arith.constant 8.000000e+00 : f32
    %87 = vector.broadcast %cst_39 : f32 to vector<1x64xf32>
    %88 = arith.divf %86, %87 : vector<1x64xf32>
    %89 = vector.broadcast %88 : vector<1x64xf32> to vector<8x64xf32>
    %90 = arith.subf %83, %89 : vector<8x64xf32>
    %91 = arith.mulf %90, %90 : vector<8x64xf32>
    %cst_40 = arith.constant dense<0.000000e+00> : vector<64xf32>
    %92 = vector.multi_reduction <add>, %91, %cst_40 [0] : vector<8x64xf32> to vector<64xf32>
    %93 = vector.shape_cast %92 : vector<64xf32> to vector<1x64xf32>
    %cst_41 = arith.constant 8.000000e+00 : f32
    %94 = vector.broadcast %cst_41 : f32 to vector<1x64xf32>
    %95 = arith.divf %93, %94 : vector<1x64xf32>
    %cst_42 = arith.constant 9.99999974E-6 : f32
    %96 = vector.broadcast %cst_42 : f32 to vector<1x64xf32>
    %97 = arith.addf %95, %96 : vector<1x64xf32>
    %98 = math.rsqrt %97 : vector<1x64xf32>
    %99 = vector.broadcast %98 : vector<1x64xf32> to vector<8x64xf32>
    %100 = arith.mulf %90, %99 : vector<8x64xf32>
    %101 = vector.extract_strided_slice %84 {offsets = [0, 0], sizes = [1, 64], strides = [1, 1]} : vector<2x64xf32> to vector<1x64xf32>
    %102 = vector.broadcast %101 : vector<1x64xf32> to vector<8x64xf32>
    %103 = arith.mulf %100, %102 : vector<8x64xf32>
    %104 = vector.extract_strided_slice %84 {offsets = [1, 0], sizes = [1, 64], strides = [1, 1]} : vector<2x64xf32> to vector<1x64xf32>
    %105 = vector.broadcast %104 : vector<1x64xf32> to vector<8x64xf32>
    %106 = arith.addf %103, %105 : vector<8x64xf32>
    %cst_43 = arith.constant 0.000000e+00 : f32
    %107 = vector.broadcast %cst_43 : f32 to vector<8x64xf32>
    %108 = arith.maximumf %106, %107 : vector<8x64xf32>
    %c0_44 = arith.constant 0 : index
    %c0_45 = arith.constant 0 : index
    %109 = vector.load %arg5[%c0_44, %c0_45] : memref<64x24xf32, #tpu.memory_space<vmem>>, vector<64x24xf32>
    %cst_46 = arith.constant dense<0.000000e+00> : vector<8x24xf32>
    %110 = tpu.matmul %108, %109, %cst_46 {dimension_numbers = #tpu.dot_dimension_numbers<[1], [0], [0], [1], [0, 0, 1, 1], [], []>} : vector<8x64xf32>, vector<64x24xf32>, vector<8x24xf32> -> vector<8x24xf32>
    %c0_47 = arith.constant 0 : index
    %c0_48 = arith.constant 0 : index
    %111 = vector.load %arg10[%c0_47, %c0_48] : memref<1x24xf32, #tpu.memory_space<vmem>>, vector<1x24xf32>
    %112 = vector.broadcast %111 : vector<1x24xf32> to vector<8x24xf32>
    %113 = arith.addf %110, %112 : vector<8x24xf32>
    %cst_49 = arith.constant 0.000000e+00 : f32
    %114 = vector.broadcast %cst_49 : f32 to vector<8x24xf32>
    %115 = arith.maximumf %113, %114 : vector<8x24xf32>
    %c0_50 = arith.constant 0 : index
    %c0_51 = arith.constant 0 : index
    %116 = vector.load %arg11[%c0_50, %c0_51] : memref<8x24xf32, #tpu.memory_space<vmem>>, vector<8x24xf32>
    tpu.vector_store %arg11[%c0_50, %c0_51], %115 {strides = array<i32>} : memref<8x24xf32, #tpu.memory_space<vmem>>, vector<8x24xf32>,
    return
  }
}

</mosaic_0001>

<llo_original>
// kernel: dann_forward.1
$region0: #{dann_forward.1}
  #allocation0 [shape = 'u32[]', space=smem, size = 0x4, offset = 0x4, fixed_abs, tag = 'smem constant byte address 0x4 - core index']
  #allocation1 [shape = 'u32[144,128]{1,0:T(1,128)}', space=vmem, size = 0x12000, scoped, tag = 'internal scratch']
  %s0 = inlined_call_operand.vmem [shape: f32[8,32], index: 0, kind: input, shape index: {}]
  %s1 = inlined_call_operand.vmem [shape: f32[32,64], index: 1, kind: input, shape index: {}]
  %s2 = inlined_call_operand.vmem [shape: f32[64,32], index: 2, kind: input, shape index: {}]
  %s3 = inlined_call_operand.vmem [shape: f32[32,64], index: 3, kind: input, shape index: {}]
  %s4 = inlined_call_operand.vmem [shape: f32[64,64], index: 4, kind: input, shape index: {}]
  %s5 = inlined_call_operand.vmem [shape: f32[64,24], index: 5, kind: input, shape index: {}]
  %s6 = inlined_call_operand.vmem [shape: f32[2,64], index: 6, kind: input, shape index: {}]
  %s7 = inlined_call_operand.vmem [shape: f32[2,32], index: 7, kind: input, shape index: {}]
  %s8 = inlined_call_operand.vmem [shape: f32[2,64], index: 8, kind: input, shape index: {}]
  %s9 = inlined_call_operand.vmem [shape: f32[2,64], index: 9, kind: input, shape index: {}]
  %s10 = inlined_call_operand.vmem [shape: f32[1,24], index: 10, kind: input, shape index: {}]
  %s11 = inlined_call_operand.vmem [shape: f32[8,24], index: 11, kind: output, shape index: {}]
  %s12 = sld [smem:[#allocation0]]
  $region54: #{dann_forward.1} parent=0
    _
  %s14 = ssub.s32 1, %s12
  %s15 = scalar_select 0, %s14, %s12
  // Predicated region
  $region2: #{dann_forward.1} parent=0 // pred_check
    _
  $region3: #{dann_forward.1} parent=0 // pred_check_branch
    %17 = sbr.rel (0) target = $region5
  $region4: #{dann_forward.1} parent=0 // pred_region
    _
  $region5: #{dann_forward.1} parent=0 // pred_fallthru
    _
  // Predicated region
  $region6: #{dann_forward.1} parent=0 // pred_check
    _
  $region7: #{dann_forward.1} parent=0 // pred_check_branch
    %19 = sbr.rel (0) target = $region9
  $region8: #{dann_forward.1} parent=0 // pred_region
    _
  $region9: #{dann_forward.1} parent=0 // pred_fallthru
    _
  // Predicated region
  $region10: #{dann_forward.1} parent=0 // pred_check
    _
  $region11: #{dann_forward.1} parent=0 // pred_check_branch
    %21 = sbr.rel (0) target = $region13
  $region12: #{dann_forward.1} parent=0 // pred_region
    _
  $region13: #{dann_forward.1} parent=0 // pred_fallthru
    _
  // Predicated region
  $region14: #{dann_forward.1} parent=0 // pred_check
    _
  $region15: #{dann_forward.1} parent=0 // pred_check_branch
    %23 = sbr.rel (0) target = $region17
  $region16: #{dann_forward.1} parent=0 // pred_region
    _
  $region17: #{dann_forward.1} parent=0 // pred_fallthru
    _
  // Predicated region
  $region18: #{dann_forward.1} parent=0 // pred_check
    _
  $region19: #{dann_forward.1} parent=0 // pred_check_branch
    %25 = sbr.rel (0) target = $region21
  $region20: #{dann_forward.1} parent=0 // pred_region
    _
  $region21: #{dann_forward.1} parent=0 // pred_fallthru
    _
  // Predicated region
  $region22: #{dann_forward.1} parent=0 // pred_check
    _
  $region23: #{dann_forward.1} parent=0 // pred_check_branch
    %27 = sbr.rel (0) target = $region25
  $region24: #{dann_forward.1} parent=0 // pred_region
    _
  $region25: #{dann_forward.1} parent=0 // pred_fallthru
    _
  // Predicated region
  $region26: #{dann_forward.1} parent=0 // pred_check
    _
  $region27: #{dann_forward.1} parent=0 // pred_check_branch
    %29 = sbr.rel (0) target = $region29
  $region28: #{dann_forward.1} parent=0 // pred_region
    _
  $region29: #{dann_forward.1} parent=0 // pred_fallthru
    _
  // Predicated region
  $region30: #{dann_forward.1} parent=0 // pred_check
    _
  $region31: #{dann_forward.1} parent=0 // pred_check_branch
    %31 = sbr.rel (0) target = $region33
  $region32: #{dann_forward.1} parent=0 // pred_region
    _
  $region33: #{dann_forward.1} parent=0 // pred_fallthru
    _
  // Predicated region
  $region34: #{dann_forward.1} parent=0 // pred_check
    _
  $region35: #{dann_forward.1} parent=0 // pred_check_branch
    %33 = sbr.rel (0) target = $region37
  $region36: #{dann_forward.1} parent=0 // pred_region
    _
  $region37: #{dann_forward.1} parent=0 // pred_fallthru
    _
  // Predicated region
  $region38: #{dann_forward.1} parent=0 // pred_check
    _
  $region39: #{dann_forward.1} parent=0 // pred_check_branch
    %35 = sbr.rel (0) target = $region41
  $region40: #{dann_forward.1} parent=0 // pred_region
    _
  $region41: #{dann_forward.1} parent=0 // pred_fallthru
    _
  // Predicated region
  $region42: #{dann_forward.1} parent=0 // pred_check
    _
  $region43: #{dann_forward.1} parent=0 // pred_check_branch
    %37 = sbr.rel (0) target = $region45
  $region44: #{dann_forward.1} parent=0 // pred_region
    _
  $region45: #{dann_forward.1} parent=0 // pred_fallthru
    _
  %v38 = vld [vmem:[%s0] sm:$0xff]
  %v39 = vld [vmem:[%s1] sm:$0xff]
  %v40 = vld [vmem:[%s1 + $0x8] sm:$0xff]
  %v41 = vld [vmem:[%s1 + $0x10] sm:$0xff]
  %v42 = vld [vmem:[%s1 + $0x18] sm:$0xff]
  %vm43 = vcmask 261120
  %v45 = vsel %vm43, %v38, 0
  %47 = vmatprep.subr.mxu0 0.0
  %48 = vmatpush1.msra.mxu0 %v39
  %49 = vmatprep.subr.mxu0 0.0
  %50 = vmatpush1.msra.mxu0 %v40
  %51 = vmatprep.subr.mxu0 0.0
  %52 = vmatpush1.msra.mxu0 %v41
  %53 = vmatprep.subr.mxu0 0.0
  %54 = vmatpush1.msra.mxu0 %v42
  %55 = vmatprep.subr.mxu0 0.0
  %56 = vmatpush1.msra.mxu0 0.0
  %57 = vmatprep.subr.mxu0 0.0
  %58 = vmatpush1.msra.mxu0 0.0
  %59 = vmatprep.subr.mxu0 0.0
  %60 = vmatpush1.msra.mxu0 0.0
  %61 = vmatprep.subr.mxu0 0.0
  %62 = vmatpush1.msra.mxu0 0.0
  %63 = vmatprep.subr.mxu0 0.0
  %64 = vmatpush1.msra.mxu0 0.0
  %65 = vmatprep.subr.mxu0 0.0
  %66 = vmatpush1.msra.mxu0 0.0
  %67 = vmatprep.subr.mxu0 0.0
  %68 = vmatpush1.msra.mxu0 0.0
  %69 = vmatprep.subr.mxu0 0.0
  %70 = vmatpush1.msra.mxu0 0.0
  %71 = vmatprep.subr.mxu0 0.0
  %72 = vmatpush1.msra.mxu0 0.0
  %73 = vmatprep.subr.mxu0 0.0
  %74 = vmatpush1.msra.mxu0 0.0
  %75 = vmatprep.subr.mxu0 0.0
  %76 = vmatpush1.msra.mxu0 0.0
  %77 = vmatprep.subr.mxu0 0.0
  %78 = vmatpush1.msra.mxu0 0.0
  %79 = vmatprep.subr.mxu0 0.0
  %80 = vmatpush1.msra.mxu0 0.0
  %81 = vmatprep.subr.mxu0 0.0
  %82 = vmatpush1.msra.mxu0 0.0
  %83 = vmatprep.subr.mxu0 0.0
  %84 = vmatpush1.msra.mxu0 0.0
  %85 = vmatprep.subr.mxu0 0.0
  %86 = vmatpush1.msra.mxu0 0.0
  %87 = vmatprep.subr.mxu0 0.0
  %88 = vmatpush1.msra.mxu0 0.0
  %89 = vmatprep.subr.mxu0 0.0
  %90 = vmatpush1.msra.mxu0 0.0
  %91 = vmatprep.subr.mxu0 0.0
  %92 = vmatpush1.msra.mxu0 0.0
  %93 = vmatprep.subr.mxu0 0.0
  %94 = vmatpush1.msra.mxu0 0.0
  %95 = vmatprep.subr.mxu0 0.0
  %96 = vmatpush1.msra.mxu0 0.0
  %97 = vmatprep.subr.mxu0 0.0
  %98 = vmatpush1.msra.mxu0 0.0
  %99 = vmatprep.subr.mxu0 0.0
  %100 = vmatpush1.msra.mxu0 0.0
  %101 = vmatprep.subr.mxu0 0.0
  %102 = vmatpush1.msra.mxu0 0.0
  %103 = vmatprep.subr.mxu0 0.0
  %104 = vmatpush1.msra.mxu0 0.0
  %105 = vmatprep.subr.mxu0 0.0
  %106 = vmatpush1.msra.mxu0 0.0
  %107 = vmatprep.subr.mxu0 0.0
  %108 = vmatpush1.msra.mxu0 0.0
  %109 = vmatprep.subr.mxu0 0.0
  %110 = vmatpush1.msra.mxu0 0.0
  %111 = vmatprep.mubr.f32.mxu0 0.0
  %112 = vmatmul.mubr.f32.gmra.mrb[0].mxu0 %v45
  %v113 = vpop.f32.mrb[0].mxu0
  %v114 = vadd.f32 0.0, %v113
  %v115 = vpop.f32.mrb[0].mxu0
  %116 = vdwg.mxu0
  %v117 = vld [vmem:[%s6] sm:$0x3]
  %vm118 = vcmask 523264
  %v119 = vsel %vm118, %v114, 0.0
  %v120 = vrot.slane %v119, 4
  %v121 = vadd.f32 %v119, %v120
  %v122 = vrot.slane %v121, 2
  %v123 = vadd.f32 %v121, %v122
  %v124 = vrot.slane %v123, 1
  %v125 = vadd.f32 %v123, %v124
  %v126 = vrcp.pop 8.0
  %v127 = vmul.f32 %v125, %v126
  %v128 = vsub.f32 %v114, %v127
  %v129 = vmul.f32 %v128, %v128
  %v130 = vsel %vm118, %v129, 0.0
  %v131 = vrot.slane %v130, 4
  %v132 = vadd.f32 %v130, %v131
  %v133 = vrot.slane %v132, 2
  %v134 = vadd.f32 %v132, %v133
  %v135 = vrot.slane %v134, 1
  %v136 = vadd.f32 %v134, %v135
  %v137 = vmul.f32 %v136, %v126
  %v138 = vadd.f32 %v137, 1e-05
  %v139 = vrsqrt.pop %v138
  %v140 = vmul.f32 %v128, %v139
  %v141 = vlaneseq
  %v142 = vshrl.u32 %v141, 7
  %v143 = vsub.s32 0, %v142
  %v144 = vrot.slane %v117, %v143
  %v145 = vmul.f32 %v140, %v144
  %v146 = vlaneseq
  %v147 = vshrl.u32 %v146, 7
  %v148 = vsub.s32 1, %v147
  %v149 = vrot.slane %v117, %v148
  %v150 = vadd.f32 %v145, %v149
  %v151 = vmax.f32 %v150, 0.0
  %v152 = vld [vmem:[%s2] sm:$0xff]
  %v153 = vld [vmem:[%s2 + $0x8] sm:$0xff]
  %v154 = vld [vmem:[%s2 + $0x10] sm:$0xff]
  %v155 = vld [vmem:[%s2 + $0x18] sm:$0xff]
  %v156 = vld [vmem:[%s2 + $0x20] sm:$0xff]
  %v157 = vld [vmem:[%s2 + $0x28] sm:$0xff]
  %v158 = vld [vmem:[%s2 + $0x30] sm:$0xff]
  %v159 = vld [vmem:[%s2 + $0x38] sm:$0xff]
  %v161 = vsel %vm118, %v151, 0
  %163 = vmatprep.subr.mxu0 0.0
  %164 = vmatpush1.msra.mxu0 %v152
  %165 = vmatprep.subr.mxu0 0.0
  %166 = vmatpush1.msra.mxu0 %v153
  %167 = vmatprep.subr.mxu0 0.0
  %168 = vmatpush1.msra.mxu0 %v154
  %169 = vmatprep.subr.mxu0 0.0
  %170 = vmatpush1.msra.mxu0 %v155
  %171 = vmatprep.subr.mxu0 0.0
  %172 = vmatpush1.msra.mxu0 %v156
  %173 = vmatprep.subr.mxu0 0.0
  %174 = vmatpush1.msra.mxu0 %v157
  %175 = vmatprep.subr.mxu0 0.0
  %176 = vmatpush1.msra.mxu0 %v158
  %177 = vmatprep.subr.mxu0 0.0
  %178 = vmatpush1.msra.mxu0 %v159
  %179 = vmatprep.subr.mxu0 0.0
  %180 = vmatpush1.msra.mxu0 0.0
  %181 = vmatprep.subr.mxu0 0.0
  %182 = vmatpush1.msra.mxu0 0.0
  %183 = vmatprep.subr.mxu0 0.0
  %184 = vmatpush1.msra.mxu0 0.0
  %185 = vmatprep.subr.mxu0 0.0
  %186 = vmatpush1.msra.mxu0 0.0
  %187 = vmatprep.subr.mxu0 0.0
  %188 = vmatpush1.msra.mxu0 0.0
  %189 = vmatprep.subr.mxu0 0.0
  %190 = vmatpush1.msra.mxu0 0.0
  %191 = vmatprep.subr.mxu0 0.0
  %192 = vmatpush1.msra.mxu0 0.0
  %193 = vmatprep.subr.mxu0 0.0
  %194 = vmatpush1.msra.mxu0 0.0
  %195 = vmatprep.subr.mxu0 0.0
  %196 = vmatpush1.msra.mxu0 0.0
  %197 = vmatprep.subr.mxu0 0.0
  %198 = vmatpush1.msra.mxu0 0.0
  %199 = vmatprep.subr.mxu0 0.0
  %200 = vmatpush1.msra.mxu0 0.0
  %201 = vmatprep.subr.mxu0 0.0
  %202 = vmatpush1.msra.mxu0 0.0
  %203 = vmatprep.subr.mxu0 0.0
  %204 = vmatpush1.msra.mxu0 0.0
  %205 = vmatprep.subr.mxu0 0.0
  %206 = vmatpush1.msra.mxu0 0.0
  %207 = vmatprep.subr.mxu0 0.0
  %208 = vmatpush1.msra.mxu0 0.0
  %209 = vmatprep.subr.mxu0 0.0
  %210 = vmatpush1.msra.mxu0 0.0
  %211 = vmatprep.subr.mxu0 0.0
  %212 = vmatpush1.msra.mxu0 0.0
  %213 = vmatprep.subr.mxu0 0.0
  %214 = vmatpush1.msra.mxu0 0.0
  %215 = vmatprep.subr.mxu0 0.0
  %216 = vmatpush1.msra.mxu0 0.0
  %217 = vmatprep.subr.mxu0 0.0
  %218 = vmatpush1.msra.mxu0 0.0
  %219 = vmatprep.subr.mxu0 0.0
  %220 = vmatpush1.msra.mxu0 0.0
  %221 = vmatprep.subr.mxu0 0.0
  %222 = vmatpush1.msra.mxu0 0.0
  %223 = vmatprep.subr.mxu0 0.0
  %224 = vmatpush1.msra.mxu0 0.0
  %225 = vmatprep.subr.mxu0 0.0
  %226 = vmatpush1.msra.mxu0 0.0
  %227 = vmatprep.mubr.f32.mxu0 0.0
  %228 = vmatmul.mubr.f32.gmra.mrb[0].mxu0 %v161
  %v229 = vpop.f32.mrb[0].mxu0
  %v230 = vadd.f32 0.0, %v229
  %v231 = vpop.f32.mrb[0].mxu0
  %232 = vdwg.mxu0
  %v233 = vld [vmem:[%s7] sm:$0x3]
  %v234 = vsel %vm43, %v230, 0.0
  %v235 = vrot.slane %v234, 4
  %v236 = vadd.f32 %v234, %v235
  %v237 = vrot.slane %v236, 2
  %v238 = vadd.f32 %v236, %v237
  %v239 = vrot.slane %v238, 1
  %v240 = vadd.f32 %v238, %v239
  %v241 = vmul.f32 %v240, %v126
  %v242 = vsub.f32 %v230, %v241
  %v243 = vmul.f32 %v242, %v242
  %v244 = vsel %vm43, %v243, 0.0
  %v245 = vrot.slane %v244, 4
  %v246 = vadd.f32 %v244, %v245
  %v247 = vrot.slane %v246, 2
  %v248 = vadd.f32 %v246, %v247
  %v249 = vrot.slane %v248, 1
  %v250 = vadd.f32 %v248, %v249
  %v251 = vmul.f32 %v250, %v126
  %v252 = vadd.f32 %v251, 1e-05
  %v253 = vrsqrt.pop %v252
  %v254 = vmul.f32 %v242, %v253
  %v255 = vlaneseq
  %v256 = vshrl.u32 %v255, 7
  %v257 = vsub.s32 0, %v256
  %v258 = vrot.slane %v233, %v257
  %v259 = vmul.f32 %v254, %v258
  %v260 = vlaneseq
  %v261 = vshrl.u32 %v260, 7
  %v262 = vsub.s32 1, %v261
  %v263 = vrot.slane %v233, %v262
  %v264 = vadd.f32 %v259, %v263
  %v265 = vmax.f32 %v264, 0.0
  %v266 = vld [vmem:[%s3] sm:$0xff]
  %v267 = vld [vmem:[%s3 + $0x8] sm:$0xff]
  %v268 = vld [vmem:[%s3 + $0x10] sm:$0xff]
  %v269 = vld [vmem:[%s3 + $0x18] sm:$0xff]
  %v271 = vsel %vm43, %v265, 0
  %273 = vmatprep.subr.mxu0 0.0
  %274 = vmatpush1.msra.mxu0 %v266
  %275 = vmatprep.subr.mxu0 0.0
  %276 = vmatpush1.msra.mxu0 %v267
  %277 = vmatprep.subr.mxu0 0.0
  %278 = vmatpush1.msra.mxu0 %v268
  %279 = vmatprep.subr.mxu0 0.0
  %280 = vmatpush1.msra.mxu0 %v269
  %281 = vmatprep.subr.mxu0 0.0
  %282 = vmatpush1.msra.mxu0 0.0
  %283 = vmatprep.subr.mxu0 0.0
  %284 = vmatpush1.msra.mxu0 0.0
  %285 = vmatprep.subr.mxu0 0.0
  %286 = vmatpush1.msra.mxu0 0.0
  %287 = vmatprep.subr.mxu0 0.0
  %288 = vmatpush1.msra.mxu0 0.0
  %289 = vmatprep.subr.mxu0 0.0
  %290 = vmatpush1.msra.mxu0 0.0
  %291 = vmatprep.subr.mxu0 0.0
  %292 = vmatpush1.msra.mxu0 0.0
  %293 = vmatprep.subr.mxu0 0.0
  %294 = vmatpush1.msra.mxu0 0.0
  %295 = vmatprep.subr.mxu0 0.0
  %296 = vmatpush1.msra.mxu0 0.0
  %297 = vmatprep.subr.mxu0 0.0
  %298 = vmatpush1.msra.mxu0 0.0
  %299 = vmatprep.subr.mxu0 0.0
  %300 = vmatpush1.msra.mxu0 0.0
  %301 = vmatprep.subr.mxu0 0.0
  %302 = vmatpush1.msra.mxu0 0.0
  %303 = vmatprep.subr.mxu0 0.0
  %304 = vmatpush1.msra.mxu0 0.0
  %305 = vmatprep.subr.mxu0 0.0
  %306 = vmatpush1.msra.mxu0 0.0
  %307 = vmatprep.subr.mxu0 0.0
  %308 = vmatpush1.msra.mxu0 0.0
  %309 = vmatprep.subr.mxu0 0.0
  %310 = vmatpush1.msra.mxu0 0.0
  %311 = vmatprep.subr.mxu0 0.0
  %312 = vmatpush1.msra.mxu0 0.0
  %313 = vmatprep.subr.mxu0 0.0
  %314 = vmatpush1.msra.mxu0 0.0
  %315 = vmatprep.subr.mxu0 0.0
  %316 = vmatpush1.msra.mxu0 0.0
  %317 = vmatprep.subr.mxu0 0.0
  %318 = vmatpush1.msra.mxu0 0.0
  %319 = vmatprep.subr.mxu0 0.0
  %320 = vmatpush1.msra.mxu0 0.0
  %321 = vmatprep.subr.mxu0 0.0
  %322 = vmatpush1.msra.mxu0 0.0
  %323 = vmatprep.subr.mxu0 0.0
  %324 = vmatpush1.msra.mxu0 0.0
  %325 = vmatprep.subr.mxu0 0.0
  %326 = vmatpush1.msra.mxu0 0.0
  %327 = vmatprep.subr.mxu0 0.0
  %328 = vmatpush1.msra.mxu0 0.0
  %329 = vmatprep.subr.mxu0 0.0
  %330 = vmatpush1.msra.mxu0 0.0
  %331 = vmatprep.subr.mxu0 0.0
  %332 = vmatpush1.msra.mxu0 0.0
  %333 = vmatprep.subr.mxu0 0.0
  %334 = vmatpush1.msra.mxu0 0.0
  %335 = vmatprep.subr.mxu0 0.0
  %336 = vmatpush1.msra.mxu0 0.0
  %337 = vmatprep.mubr.f32.mxu0 0.0
  %338 = vmatmul.mubr.f32.gmra.mrb[0].mxu0 %v271
  %v339 = vpop.f32.mrb[0].mxu0
  %v340 = vadd.f32 0.0, %v339
  %v341 = vpop.f32.mrb[0].mxu0
  %342 = vdwg.mxu0
  %v343 = vld [vmem:[%s8] sm:$0x3]
  %v344 = vsel %vm118, %v340, 0.0
  %v345 = vrot.slane %v344, 4
  %v346 = vadd.f32 %v344, %v345
  %v347 = vrot.slane %v346, 2
  %v348 = vadd.f32 %v346, %v347
  %v349 = vrot.slane %v348, 1
  %v350 = vadd.f32 %v348, %v349
  %v351 = vmul.f32 %v350, %v126
  %v352 = vsub.f32 %v340, %v351
  %v353 = vmul.f32 %v352, %v352
  %v354 = vsel %vm118, %v353, 0.0
  %v355 = vrot.slane %v354, 4
  %v356 = vadd.f32 %v354, %v355
  %v357 = vrot.slane %v356, 2
  %v358 = vadd.f32 %v356, %v357
  %v359 = vrot.slane %v358, 1
  %v360 = vadd.f32 %v358, %v359
  %v361 = vmul.f32 %v360, %v126
  %v362 = vadd.f32 %v361, 1e-05
  %v363 = vrsqrt.pop %v362
  %v364 = vmul.f32 %v352, %v363
  %v365 = vlaneseq
  %v366 = vshrl.u32 %v365, 7
  %v367 = vsub.s32 0, %v366
  %v368 = vrot.slane %v343, %v367
  %v369 = vmul.f32 %v364, %v368
  %v370 = vlaneseq
  %v371 = vshrl.u32 %v370, 7
  %v372 = vsub.s32 1, %v371
  %v373 = vrot.slane %v343, %v372
  %v374 = vadd.f32 %v369, %v373
  %v375 = vmax.f32 %v374, 0.0
  %v376 = vld [vmem:[%s4] sm:$0xff]
  %v377 = vld [vmem:[%s4 + $0x8] sm:$0xff]
  %v378 = vld [vmem:[%s4 + $0x10] sm:$0xff]
  %v379 = vld [vmem:[%s4 + $0x18] sm:$0xff]
  %v380 = vld [vmem:[%s4 + $0x20] sm:$0xff]
  %v381 = vld [vmem:[%s4 + $0x28] sm:$0xff]
  %v382 = vld [vmem:[%s4 + $0x30] sm:$0xff]
  %v383 = vld [vmem:[%s4 + $0x38] sm:$0xff]
  %v385 = vsel %vm118, %v375, 0
  %387 = vmatprep.subr.mxu0 0.0
  %388 = vmatpush1.msra.mxu0 %v376
  %389 = vmatprep.subr.mxu0 0.0
  %390 = vmatpush1.msra.mxu0 %v377
  %391 = vmatprep.subr.mxu0 0.0
  %392 = vmatpush1.msra.mxu0 %v378
  %393 = vmatprep.subr.mxu0 0.0
  %394 = vmatpush1.msra.mxu0 %v379
  %395 = vmatprep.subr.mxu0 0.0
  %396 = vmatpush1.msra.mxu0 %v380
  %397 = vmatprep.subr.mxu0 0.0
  %398 = vmatpush1.msra.mxu0 %v381
  %399 = vmatprep.subr.mxu0 0.0
  %400 = vmatpush1.msra.mxu0 %v382
  %401 = vmatprep.subr.mxu0 0.0
  %402 = vmatpush1.msra.mxu0 %v383
  %403 = vmatprep.subr.mxu0 0.0
  %404 = vmatpush1.msra.mxu0 0.0
  %405 = vmatprep.subr.mxu0 0.0
  %406 = vmatpush1.msra.mxu0 0.0
  %407 = vmatprep.subr.mxu0 0.0
  %408 = vmatpush1.msra.mxu0 0.0
  %409 = vmatprep.subr.mxu0 0.0
  %410 = vmatpush1.msra.mxu0 0.0
  %411 = vmatprep.subr.mxu0 0.0
  %412 = vmatpush1.msra.mxu0 0.0
  %413 = vmatprep.subr.mxu0 0.0
  %414 = vmatpush1.msra.mxu0 0.0
  %415 = vmatprep.subr.mxu0 0.0
  %416 = vmatpush1.msra.mxu0 0.0
  %417 = vmatprep.subr.mxu0 0.0
  %418 = vmatpush1.msra.mxu0 0.0
  %419 = vmatprep.subr.mxu0 0.0
  %420 = vmatpush1.msra.mxu0 0.0
  %421 = vmatprep.subr.mxu0 0.0
  %422 = vmatpush1.msra.mxu0 0.0
  %423 = vmatprep.subr.mxu0 0.0
  %424 = vmatpush1.msra.mxu0 0.0
  %425 = vmatprep.subr.mxu0 0.0
  %426 = vmatpush1.msra.mxu0 0.0
  %427 = vmatprep.subr.mxu0 0.0
  %428 = vmatpush1.msra.mxu0 0.0
  %429 = vmatprep.subr.mxu0 0.0
  %430 = vmatpush1.msra.mxu0 0.0
  %431 = vmatprep.subr.mxu0 0.0
  %432 = vmatpush1.msra.mxu0 0.0
  %433 = vmatprep.subr.mxu0 0.0
  %434 = vmatpush1.msra.mxu0 0.0
  %435 = vmatprep.subr.mxu0 0.0
  %436 = vmatpush1.msra.mxu0 0.0
  %437 = vmatprep.subr.mxu0 0.0
  %438 = vmatpush1.msra.mxu0 0.0
  %439 = vmatprep.subr.mxu0 0.0
  %440 = vmatpush1.msra.mxu0 0.0
  %441 = vmatprep.subr.mxu0 0.0
  %442 = vmatpush1.msra.mxu0 0.0
  %443 = vmatprep.subr.mxu0 0.0
  %444 = vmatpush1.msra.mxu0 0.0
  %445 = vmatprep.subr.mxu0 0.0
  %446 = vmatpush1.msra.mxu0 0.0
  %447 = vmatprep.subr.mxu0 0.0
  %448 = vmatpush1.msra.mxu0 0.0
  %449 = vmatprep.subr.mxu0 0.0
  %450 = vmatpush1.msra.mxu0 0.0
  %451 = vmatprep.mubr.f32.mxu0 0.0
  %452 = vmatmul.mubr.f32.gmra.mrb[0].mxu0 %v385
  %v453 = vpop.f32.mrb[0].mxu0
  %v454 = vadd.f32 0.0, %v453
  %v455 = vpop.f32.mrb[0].mxu0
  %456 = vdwg.mxu0
  %v457 = vld [vmem:[%s9] sm:$0x3]
  %v458 = vsel %vm118, %v454, 0.0
  %v459 = vrot.slane %v458, 4
  %v460 = vadd.f32 %v458, %v459
  %v461 = vrot.slane %v460, 2
  %v462 = vadd.f32 %v460, %v461
  %v463 = vrot.slane %v462, 1
  %v464 = vadd.f32 %v462, %v463
  %v465 = vmul.f32 %v464, %v126
  %v466 = vsub.f32 %v454, %v465
  %v467 = vmul.f32 %v466, %v466
  %v468 = vsel %vm118, %v467, 0.0
  %v469 = vrot.slane %v468, 4
  %v470 = vadd.f32 %v468, %v469
  %v471 = vrot.slane %v470, 2
  %v472 = vadd.f32 %v470, %v471
  %v473 = vrot.slane %v472, 1
  %v474 = vadd.f32 %v472, %v473
  %v475 = vmul.f32 %v474, %v126
  %v476 = vadd.f32 %v475, 1e-05
  %v477 = vrsqrt.pop %v476
  %v478 = vmul.f32 %v466, %v477
  %v479 = vlaneseq
  %v480 = vshrl.u32 %v479, 7
  %v481 = vsub.s32 0, %v480
  %v482 = vrot.slane %v457, %v481
  %v483 = vmul.f32 %v478, %v482
  %v484 = vlaneseq
  %v485 = vshrl.u32 %v484, 7
  %v486 = vsub.s32 1, %v485
  %v487 = vrot.slane %v457, %v486
  %v488 = vadd.f32 %v483, %v487
  %v489 = vmax.f32 %v488, 0.0
  %v490 = vld [vmem:[%s5] sm:$0xff]
  %v491 = vld [vmem:[%s5 + $0x8] sm:$0xff]
  %v492 = vld [vmem:[%s5 + $0x10] sm:$0xff]
  %v493 = vld [vmem:[%s5 + $0x18] sm:$0xff]
  %v494 = vld [vmem:[%s5 + $0x20] sm:$0xff]
  %v495 = vld [vmem:[%s5 + $0x28] sm:$0xff]
  %v496 = vld [vmem:[%s5 + $0x30] sm:$0xff]
  %v497 = vld [vmem:[%s5 + $0x38] sm:$0xff]
  %v498 = vld [vmem:[%s10] sm:$0x1]
  %v500 = vlaneseq
  %v501 = vshrl.u32 %v500, 7
  %v502 = vsub.s32 0, %v501
  %v503 = vrot.slane %v498, %v502
  %v506 = vsel %vm118, %v489, 0
  %508 = vmatprep.subr.mxu0 0.0
  %509 = vmatpush1.msra.mxu0 %v490
  %510 = vmatprep.subr.mxu0 0.0
  %511 = vmatpush1.msra.mxu0 %v491
  %512 = vmatprep.subr.mxu0 0.0
  %513 = vmatpush1.msra.mxu0 %v492
  %514 = vmatprep.subr.mxu0 0.0
  %515 = vmatpush1.msra.mxu0 %v493
  %516 = vmatprep.subr.mxu0 0.0
  %517 = vmatpush1.msra.mxu0 %v494
  %518 = vmatprep.subr.mxu0 0.0
  %519 = vmatpush1.msra.mxu0 %v495
  %520 = vmatprep.subr.mxu0 0.0
  %521 = vmatpush1.msra.mxu0 %v496
  %522 = vmatprep.subr.mxu0 0.0
  %523 = vmatpush1.msra.mxu0 %v497
  %524 = vmatprep.subr.mxu0 0.0
  %525 = vmatpush1.msra.mxu0 0.0
  %526 = vmatprep.subr.mxu0 0.0
  %527 = vmatpush1.msra.mxu0 0.0
  %528 = vmatprep.subr.mxu0 0.0
  %529 = vmatpush1.msra.mxu0 0.0
  %530 = vmatprep.subr.mxu0 0.0
  %531 = vmatpush1.msra.mxu0 0.0
  %532 = vmatprep.subr.mxu0 0.0
  %533 = vmatpush1.msra.mxu0 0.0
  %534 = vmatprep.subr.mxu0 0.0
  %535 = vmatpush1.msra.mxu0 0.0
  %536 = vmatprep.subr.mxu0 0.0
  %537 = vmatpush1.msra.mxu0 0.0
  %538 = vmatprep.subr.mxu0 0.0
  %539 = vmatpush1.msra.mxu0 0.0
  %540 = vmatprep.subr.mxu0 0.0
  %541 = vmatpush1.msra.mxu0 0.0
  %542 = vmatprep.subr.mxu0 0.0
  %543 = vmatpush1.msra.mxu0 0.0
  %544 = vmatprep.subr.mxu0 0.0
  %545 = vmatpush1.msra.mxu0 0.0
  %546 = vmatprep.subr.mxu0 0.0
  %547 = vmatpush1.msra.mxu0 0.0
  %548 = vmatprep.subr.mxu0 0.0
  %549 = vmatpush1.msra.mxu0 0.0
  %550 = vmatprep.subr.mxu0 0.0
  %551 = vmatpush1.msra.mxu0 0.0
  %552 = vmatprep.subr.mxu0 0.0
  %553 = vmatpush1.msra.mxu0 0.0
  %554 = vmatprep.subr.mxu0 0.0
  %555 = vmatpush1.msra.mxu0 0.0
  %556 = vmatprep.subr.mxu0 0.0
  %557 = vmatpush1.msra.mxu0 0.0
  %558 = vmatprep.subr.mxu0 0.0
  %559 = vmatpush1.msra.mxu0 0.0
  %560 = vmatprep.subr.mxu0 0.0
  %561 = vmatpush1.msra.mxu0 0.0
  %562 = vmatprep.subr.mxu0 0.0
  %563 = vmatpush1.msra.mxu0 0.0
  %564 = vmatprep.subr.mxu0 0.0
  %565 = vmatpush1.msra.mxu0 0.0
  %566 = vmatprep.subr.mxu0 0.0
  %567 = vmatpush1.msra.mxu0 0.0
  %568 = vmatprep.subr.mxu0 0.0
  %569 = vmatpush1.msra.mxu0 0.0
  %570 = vmatprep.subr.mxu0 0.0
  %571 = vmatpush1.msra.mxu0 0.0
  %572 = vmatprep.mubr.f32.mxu0 0.0
  %573 = vmatmul.mubr.f32.gmra.mrb[0].mxu0 %v506
  %v574 = vpop.f32.mrb[0].mxu0
  %v575 = vadd.f32 %v503, %v574
  %v576 = vpop.f32.mrb[0].mxu0
  %577 = vdwg.mxu0
  %v578 = vmax.f32 %v575, 0.0
  %vm579 = vcmask 195584
  %580 = vst.msk [vmem:[%s11] sm:$0xff] %vm579, %v578
  // Predicated region
  $region46: #{dann_forward.1} parent=0 // pred_check
    _
  $region47: #{dann_forward.1} parent=0 // pred_check_branch
    %582 = sbr.rel (0) target = $region49
  $region48: #{dann_forward.1} parent=0 // pred_region
    _
  $region49: #{dann_forward.1} parent=0 // pred_fallthru
    _
  // Predicated region
  $region50: #{dann_forward.1} parent=0 // pred_check
    _
  $region51: #{dann_forward.1} parent=0 // pred_check_branch
    %584 = sbr.rel (0) target = $region53
  $region52: #{dann_forward.1} parent=0 // pred_region
    _
  $region53: #{dann_forward.1} parent=0 // pred_fallthru
    _

</llo_original>
